<compile_context>
chip_gen: v5e
topology: v5e:2x2
jax: 0.10.0
libtpu: 0.0.40
codegen_flags: <defaults>
</compile_context>

<pallas_src>
import functools
import numpy as np
import jax
import jax.numpy as jnp
from jax import lax
from jax.experimental import pallas as pl
from jax.experimental.pallas import tpu as pltpu


# ---------------------------------------------------------------------------
# Kernel A: per-image statistics.
#   x_ref   : (1, C_in, T)        chunk of the image, HW on lanes
#   w1_ref  : (C_in, C_half, 1)   conv1 weight, per-input-channel columns
#   b1_ref  : (C_half, 1)
#   w2b_ref : (C_half, C_out, 1)  conv2 weight slice acting on p5
#   cm_ref  : (1, 2, 1)           out: (cmax, cmean) of p2_vec
#   r_ref   : (1, C_out, 1)       out: r = w2b @ p2_vec   (NO bias here)
#   mx_acc / sum_acc : VMEM (C_in, 1) running reductions over HW chunks
# ---------------------------------------------------------------------------
def stats_kernel(x_ref, w1_ref, b1_ref, w2b_ref, cm_ref, r_ref,
                 mx_acc, sum_acc, *, hw_total):
    k = pl.program_id(1)

    @pl.when(k == 0)
    def _init():
        mx_acc[...] = jnp.full(mx_acc.shape, -jnp.inf, mx_acc.dtype)
        sum_acc[...] = jnp.zeros(sum_acc.shape, sum_acc.dtype)

    x = x_ref[0]                                                    # (C_in, T)
    mx_acc[...] = jnp.maximum(mx_acc[...], jnp.max(x, axis=1, keepdims=True))
    sum_acc[...] = sum_acc[...] + jnp.sum(x, axis=1, keepdims=True)

    @pl.when(k == pl.num_programs(1) - 1)
    def _finalize():
        # p1 = (global_max + global_avg) / 2   -> (C_in, 1)
        p1 = (mx_acc[...] + sum_acc[...] * (1.0 / hw_total)) * 0.5
        # conv1 (1x1, bias) on the constant map: pure VPU FMAs (exact f32)
        p2 = b1_ref[...]                                            # (C_half, 1)
        for i in range(w1_ref.shape[0]):                            # C_in (static)
            p2 = p2 + w1_ref[i] * p1[i:i + 1, :]
        # ChannelPool of the (spatially constant) conv1 output
        cm_ref[0, 0:1, :] = jnp.max(p2, axis=0, keepdims=True)      # cmax
        cm_ref[0, 1:2, :] = jnp.mean(p2, axis=0, keepdims=True)     # cmean
        # r = w2[:, C_in:] @ p2_vec   (rank-1 part of conv2; b2 stays unscaled)
        r = jnp.zeros(r_ref.shape[1:], r_ref.dtype)                 # (C_out, 1)
        for c in range(w2b_ref.shape[0]):                           # C_half (static)
            r = r + w2b_ref[c] * p2[c:c + 1, :]
        r_ref[0] = r


# ---------------------------------------------------------------------------
# Kernel B: streaming output kernel (lane-dense, channels-first).
#   x_ref   : (1, C_in, T)       image chunk
#   s_ref   : (2, T)             precomputed tap-sum maps (S0, S1)
#   cm_ref  : (1, 2, 1)          (cmax, cmean) for this image
#   r_ref   : (1, C_out, 1)      r for this image
#   w2a_ref : (C_in, C_out, 1)   conv2 weight slice acting on x
#   b2_ref  : (C_out, 1)         conv2 bias (added un-scaled)
#   o_ref   : (1, C_out, T)
# ---------------------------------------------------------------------------
def fused_out_kernel(x_ref, s_ref, cm_ref, r_ref, w2a_ref, b2_ref, o_ref):
    s = s_ref[...]                                                  # (2, T)
    cm = cm_ref[0]                                                  # (2, 1)
    lin = cm[0:1, :] * s[0:1, :] + cm[1:2, :] * s[1:2, :]           # (1, T)
    scale = jax.nn.sigmoid(lin)                                     # (1, T)
    acc = scale * r_ref[0] + b2_ref[...]                            # (C_out, T)
    x = x_ref[0]                                                    # (C_in, T)
    for c in range(x.shape[0]):                                     # C_in (static)
        acc = acc + w2a_ref[c] * x[c:c + 1, :]                      # VPU bcast FMA
    o_ref[0] = acc


# ---------------------------------------------------------------------------
# Trace-time constant: S_c[y, x] = sum of 5x5 taps landing inside the image
# (zero padding) — separable in row/col validity masks, so two tiny matmuls.
# ---------------------------------------------------------------------------
def _tap_sum_maps(w_spa, H, W):
    K = w_spa.shape[-1]
    pad = (K - 1) // 2
    kk = jnp.arange(K)[None, :]
    yy = jnp.arange(H)[:, None]
    xx = jnp.arange(W)[:, None]
    rowmask = ((yy + kk - pad >= 0) & (yy + kk - pad < H)).astype(jnp.float32)  # (H, K)
    colmask = ((xx + kk - pad >= 0) & (xx + kk - pad < W)).astype(jnp.float32)  # (W, K)
    s = jnp.einsum('hk,ckl,wl->chw', rowmask, w_spa[0].astype(jnp.float32),
                   colmask, precision=lax.Precision.HIGHEST)                     # (2, H, W)
    return s.reshape(w_spa.shape[1], H * W)


def _pick_hw_tile(hw, max_lanes):
    """Largest multiple-of-128 divisor of hw that is <= max_lanes (or hw itself)."""
    if hw <= max_lanes:
        return hw
    t = (max_lanes // 128) * 128
    while t >= 128:
        if hw % t == 0:
            return t
        t -= 128
    return hw


# ---------------------------------------------------------------------------
# Wrapper: only reshapes / tiny weight re-layouts; no transposes, no broadcast
# or pad materializations, no dtype casts.
# ---------------------------------------------------------------------------
def ha_forward(x_nchw, params):
    w1, b1, w_spa, w2, b2 = params      # w1:(C_half,C_in)  w2:(C_out,C_in+C_half)
    N, C_in, H, W = x_nchw.shape
    C_half = w1.shape[0]
    C_out = w2.shape[0]
    HW = H * W

    x = x_nchw.reshape(N, C_in, HW)                       # channels-first, HW on lanes
    s_maps = _tap_sum_maps(w_spa, H, W)                   # (2, HW), data-independent

    w1k = w1.T.reshape(C_in, C_half, 1)
    w2ak = w2[:, :C_in].T.reshape(C_in, C_out, 1)
    w2bk = w2[:, C_in:].T.reshape(C_half, C_out, 1)
    b1c = b1.reshape(C_half, 1)
    b2c = b2.reshape(C_out, 1)

    # ---- Kernel A: pooled stats + conv1 + ChannelPool + r -----------------
    t_a = _pick_hw_tile(HW, 8192)       # chunked HW reduction: VMEM-bounded on v7x
    cm, r = pl.pallas_call(
        functools.partial(stats_kernel, hw_total=float(HW)),
        out_shape=(jax.ShapeDtypeStruct((N, 2, 1), jnp.float32),
                   jax.ShapeDtypeStruct((N, C_out, 1), jnp.float32)),
        grid=(N, HW // t_a),
        in_specs=[pl.BlockSpec((1, C_in, t_a), lambda n, k: (n, 0, k)),
                  pl.BlockSpec((C_in, C_half, 1), lambda n, k: (0, 0, 0)),
                  pl.BlockSpec((C_half, 1), lambda n, k: (0, 0)),
                  pl.BlockSpec((C_half, C_out, 1), lambda n, k: (0, 0, 0))],
        out_specs=(pl.BlockSpec((1, 2, 1), lambda n, k: (n, 0, 0)),
                   pl.BlockSpec((1, C_out, 1), lambda n, k: (n, 0, 0))),
        scratch_shapes=[pltpu.VMEM((C_in, 1), jnp.float32),
                        pltpu.VMEM((C_in, 1), jnp.float32)],
        compiler_params=pltpu.CompilerParams(
            dimension_semantics=("parallel", "arbitrary")),
    )(x, w1k, b1c, w2bk)

    # ---- Kernel B: scale + conv2 (split into streamed + rank-1 parts) -----
    t_b = _pick_hw_tile(HW, 2048)
    if N * (HW // t_b) < 4 and t_b % 256 == 0:
        t_b //= 2                        # finer grid so both v7x TCs get >1 step

    out = pl.pallas_call(
        fused_out_kernel,
        out_shape=jax.ShapeDtypeStruct((N, C_out, HW), jnp.float32),
        grid=(N, HW // t_b),
        in_specs=[pl.BlockSpec((1, C_in, t_b), lambda n, k: (n, 0, k)),
                  pl.BlockSpec((2, t_b), lambda n, k: (0, k)),
                  pl.BlockSpec((1, 2, 1), lambda n, k: (n, 0, 0)),
                  pl.BlockSpec((1, C_out, 1), lambda n, k: (n, 0, 0)),
                  pl.BlockSpec((C_in, C_out, 1), lambda n, k: (0, 0, 0)),
                  pl.BlockSpec((C_out, 1), lambda n, k: (0, 0))],
        out_specs=pl.BlockSpec((1, C_out, t_b), lambda n, k: (n, 0, k)),
        compiler_params=pltpu.CompilerParams(
            dimension_semantics=("parallel", "parallel")),
    )(x, s_maps, cm, r, w2ak, b2c)

    return out.reshape(N, C_out, H, W)                    # already NCHW


# ---------------------------------------------------------------------------
# Pure-JAX reference (mirrors the PyTorch HA module semantics)
# ---------------------------------------------------------------------------
def ha_reference(x, params):
    w1, b1, w_spa, w2, b2 = params
    p1 = jnp.max(x, axis=(2, 3), keepdims=True)
    pa = jnp.mean(x, axis=(2, 3), keepdims=True)
    p1 = jnp.broadcast_to((p1 + pa) / 2, x.shape)          # nearest upsample of 1x1
    p2c = jnp.einsum('nchw,oc->nohw', p1, w1,
                     precision=lax.Precision.HIGHEST) + b1[None, :, None, None]
    xc = jnp.concatenate([jnp.max(p2c, axis=1, keepdims=True),
                          jnp.mean(p2c, axis=1, keepdims=True)], axis=1)
    conv_out = lax.conv_general_dilated(xc, w_spa, (1, 1), ((2, 2), (2, 2)),
                                        dimension_numbers=('NCHW', 'OIHW', 'NCHW'),
                                        precision=lax.Precision.HIGHEST)
    p5 = p2c * jax.nn.sigmoid(conv_out)
    p3 = jnp.concatenate([x, p5], axis=1)
    return jnp.einsum('nchw,oc->nohw', p3, w2,
                      precision=lax.Precision.HIGHEST) + b2[None, :, None, None]


if __name__ == "__main__":
    N, C_in, H, W = 2, 4, 16, 16
    C_out = 8
    C_half = C_out // 2

    key = jax.random.PRNGKey(0)
    kx, k1, k2, k3, k4, k5 = jax.random.split(key, 6)
    x = jax.random.normal(kx, (N, C_in, H, W), jnp.float32)
    # Synthetic parameters (shapes from HA.__init__)
    w1 = jax.random.normal(k1, (C_half, C_in), jnp.float32) * 0.2        # conv1 1x1 weight
    b1 = jax.random.normal(k2, (C_half,), jnp.float32) * 0.1             # conv1 bias
    w_spa = jax.random.normal(k3, (1, 2, 5, 5), jnp.float32) * 0.2       # spatial-attn 5x5, no bias
    w2 = jax.random.normal(k4, (C_out, C_in + C_half), jnp.float32) * 0.2  # conv2 1x1 weight
    b2 = jax.random.normal(k5, (C_out,), jnp.float32) * 0.1              # conv2 bias
    params = (w1, b1, w_spa, w2, b2)

    out = jax.jit(ha_forward)(x, params)
    out = jax.block_until_ready(out)

    ref = ha_reference(x, params)
    np.testing.assert_allclose(np.asarray(out), np.asarray(ref), rtol=1e-3, atol=1e-3)
    print("KERNEL_OK")
</pallas_src>

<mosaic_0001>
module attributes {stable_mosaic.version = 11 : i64} {
  func.func @stats_kernel(%arg0: i32, %arg1: i32, %arg2: memref<1x4x256xf32, #tpu.memory_space<vmem>>, %arg3: memref<4x4x1xf32, #tpu.memory_space<vmem>>, %arg4: memref<4x1xf32, #tpu.memory_space<vmem>>, %arg5: memref<4x8x1xf32, #tpu.memory_space<vmem>>, %arg6: memref<1x2x1xf32, #tpu.memory_space<vmem>>, %arg7: memref<1x8x1xf32, #tpu.memory_space<vmem>>, %arg8: memref<4x1xf32, #tpu.memory_space<vmem>>, %arg9: memref<4x1xf32, #tpu.memory_space<vmem>>) attributes {dimension_semantics = [#tpu.dimension_semantics<parallel>, #tpu.dimension_semantics<arbitrary>], iteration_bounds = array<i64: 2, 1>, scalar_prefetch = 0 : i64, scratch_operands = 2 : i64, tpu.core_type = #tpu.core_type<tc>, window_params = [{transform_indices = @transform_0, window_bounds = array<i64: 1, 4, 256>}, {pipeline_mode = #tpu.pipeline_mode<synchronous>, transform_indices = @transform_1, window_bounds = array<i64: 4, 4, 1>}, {pipeline_mode = #tpu.pipeline_mode<synchronous>, transform_indices = @transform_2, window_bounds = array<i64: 4, 1>}, {pipeline_mode = #tpu.pipeline_mode<synchronous>, transform_indices = @transform_3, window_bounds = array<i64: 4, 8, 1>}, {transform_indices = @transform_4, window_bounds = array<i64: 1, 2, 1>}, {transform_indices = @transform_5, window_bounds = array<i64: 1, 8, 1>}]} {
    %c0_i32 = arith.constant 0 : i32
    %0 = arith.cmpi eq, %arg1, %c0_i32 : i32
    %1 = arith.extui %0 : i1 to i32
    %c0_i32_0 = arith.constant 0 : i32
    %2 = arith.cmpi ne, %1, %c0_i32_0 : i32
    scf.if %2 {
      %cst_14 = arith.constant 0xFF800000 : f32
      %18 = vector.broadcast %cst_14 : f32 to vector<4x1xf32>
      %c0_15 = arith.constant 0 : index
      %c0_16 = arith.constant 0 : index
      %19 = vector.load %arg8[%c0_15, %c0_16] : memref<4x1xf32, #tpu.memory_space<vmem>>, vector<4x1xf32>
      tpu.vector_store %arg8[%c0_15, %c0_16], %18 {strides = array<i32>} : memref<4x1xf32, #tpu.memory_space<vmem>>, vector<4x1xf32>,
      %cst_17 = arith.constant 0.000000e+00 : f32
      %20 = vector.broadcast %cst_17 : f32 to vector<4x1xf32>
      %c0_18 = arith.constant 0 : index
      %c0_19 = arith.constant 0 : index
      %21 = vector.load %arg9[%c0_18, %c0_19] : memref<4x1xf32, #tpu.memory_space<vmem>>, vector<4x1xf32>
      tpu.vector_store %arg9[%c0_18, %c0_19], %20 {strides = array<i32>} : memref<4x1xf32, #tpu.memory_space<vmem>>, vector<4x1xf32>,
    } else {
    }
    %c0 = arith.constant 0 : index
    %c0_1 = arith.constant 0 : index
    %c0_2 = arith.constant 0 : index
    %3 = vector.load %arg2[%c0, %c0_1, %c0_2] : memref<1x4x256xf32, #tpu.memory_space<vmem>>, vector<1x4x256xf32>
    %4 = vector.shape_cast %3 : vector<1x4x256xf32> to vector<4x256xf32>
    %c0_3 = arith.constant 0 : index
    %c0_4 = arith.constant 0 : index
    %5 = vector.load %arg8[%c0_3, %c0_4] : memref<4x1xf32, #tpu.memory_space<vmem>>, vector<4x1xf32>
    %cst = arith.constant dense<0xFF800000> : vector<4xf32>
    %6 = vector.multi_reduction <maximumf>, %4, %cst [1] : vector<4x256xf32> to vector<4xf32>
    %7 = vector.shape_cast %6 : vector<4xf32> to vector<4x1xf32>
    %8 = arith.maximumf %5, %7 : vector<4x1xf32>
    %c0_5 = arith.constant 0 : index
    %c0_6 = arith.constant 0 : index
    %9 = vector.load %arg8[%c0_5, %c0_6] : memref<4x1xf32, #tpu.memory_space<vmem>>, vector<4x1xf32>
    tpu.vector_store %arg8[%c0_5, %c0_6], %8 {strides = array<i32>} : memref<4x1xf32, #tpu.memory_space<vmem>>, vector<4x1xf32>,
    %c0_7 = arith.constant 0 : index
    %c0_8 = arith.constant 0 : index
    %10 = vector.load %arg9[%c0_7, %c0_8] : memref<4x1xf32, #tpu.memory_space<vmem>>, vector<4x1xf32>
    %cst_9 = arith.constant dense<0.000000e+00> : vector<4xf32>
    %11 = vector.multi_reduction <add>, %4, %cst_9 [1] : vector<4x256xf32> to vector<4xf32>
    %12 = vector.shape_cast %11 : vector<4xf32> to vector<4x1xf32>
    %13 = arith.addf %10, %12 : vector<4x1xf32>
    %c0_10 = arith.constant 0 : index
    %c0_11 = arith.constant 0 : index
    %14 = vector.load %arg9[%c0_10, %c0_11] : memref<4x1xf32, #tpu.memory_space<vmem>>, vector<4x1xf32>
    tpu.vector_store %arg9[%c0_10, %c0_11], %13 {strides = array<i32>} : memref<4x1xf32, #tpu.memory_space<vmem>>, vector<4x1xf32>,
    %c0_i32_12 = arith.constant 0 : i32
    %15 = arith.cmpi eq, %arg1, %c0_i32_12 : i32
    %16 = arith.extui %15 : i1 to i32
    %c0_i32_13 = arith.constant 0 : i32
    %17 = arith.cmpi ne, %16, %c0_i32_13 : i32
    scf.if %17 {
      %c0_14 = arith.constant 0 : index
      %c0_15 = arith.constant 0 : index
      %18 = vector.load %arg8[%c0_14, %c0_15] : memref<4x1xf32, #tpu.memory_space<vmem>>, vector<4x1xf32>
      %c0_16 = arith.constant 0 : index
      %c0_17 = arith.constant 0 : index
      %19 = vector.load %arg9[%c0_16, %c0_17] : memref<4x1xf32, #tpu.memory_space<vmem>>, vector<4x1xf32>
      %cst_18 = arith.constant 3.906250e-03 : f32
      %20 = vector.broadcast %cst_18 : f32 to vector<4x1xf32>
      %21 = arith.mulf %19, %20 : vector<4x1xf32>
      %22 = arith.addf %18, %21 : vector<4x1xf32>
      %cst_19 = arith.constant 5.000000e-01 : f32
      %23 = vector.broadcast %cst_19 : f32 to vector<4x1xf32>
      %24 = arith.mulf %22, %23 : vector<4x1xf32>
      %c0_20 = arith.constant 0 : index
      %c0_21 = arith.constant 0 : index
      %25 = vector.load %arg4[%c0_20, %c0_21] : memref<4x1xf32, #tpu.memory_space<vmem>>, vector<4x1xf32>
      %c0_22 = arith.constant 0 : index
      %c0_23 = arith.constant 0 : index
      %c0_24 = arith.constant 0 : index
      %26 = vector.load %arg3[%c0_22, %c0_23, %c0_24] : memref<4x4x1xf32, #tpu.memory_space<vmem>>, vector<1x4x1xf32>
      %27 = vector.shape_cast %26 : vector<1x4x1xf32> to vector<4x1xf32>
      %28 = vector.extract_strided_slice %24 {offsets = [0, 0], sizes = [1, 1], strides = [1, 1]} : vector<4x1xf32> to vector<1x1xf32>
      %29 = vector.broadcast %28 : vector<1x1xf32> to vector<4x1xf32>
      %30 = arith.mulf %27, %29 : vector<4x1xf32>
      %31 = arith.addf %25, %30 : vector<4x1xf32>
      %c1 = arith.constant 1 : index
      %c0_25 = arith.constant 0 : index
      %c0_26 = arith.constant 0 : index
      %32 = vector.load %arg3[%c1, %c0_25, %c0_26] : memref<4x4x1xf32, #tpu.memory_space<vmem>>, vector<1x4x1xf32>
      %33 = vector.shape_cast %32 : vector<1x4x1xf32> to vector<4x1xf32>
      %34 = vector.extract_strided_slice %24 {offsets = [1, 0], sizes = [1, 1], strides = [1, 1]} : vector<4x1xf32> to vector<1x1xf32>
      %35 = vector.broadcast %34 : vector<1x1xf32> to vector<4x1xf32>
      %36 = arith.mulf %33, %35 : vector<4x1xf32>
      %37 = arith.addf %31, %36 : vector<4x1xf32>
      %c2 = arith.constant 2 : index
      %c0_27 = arith.constant 0 : index
      %c0_28 = arith.constant 0 : index
      %38 = vector.load %arg3[%c2, %c0_27, %c0_28] : memref<4x4x1xf32, #tpu.memory_space<vmem>>, vector<1x4x1xf32>
      %39 = vector.shape_cast %38 : vector<1x4x1xf32> to vector<4x1xf32>
      %40 = vector.extract_strided_slice %24 {offsets = [2, 0], sizes = [1, 1], strides = [1, 1]} : vector<4x1xf32> to vector<1x1xf32>
      %41 = vector.broadcast %40 : vector<1x1xf32> to vector<4x1xf32>
      %42 = arith.mulf %39, %41 : vector<4x1xf32>
      %43 = arith.addf %37, %42 : vector<4x1xf32>
      %c3 = arith.constant 3 : index
      %c0_29 = arith.constant 0 : index
      %c0_30 = arith.constant 0 : index
      %44 = vector.load %arg3[%c3, %c0_29, %c0_30] : memref<4x4x1xf32, #tpu.memory_space<vmem>>, vector<1x4x1xf32>
      %45 = vector.shape_cast %44 : vector<1x4x1xf32> to vector<4x1xf32>
      %46 = vector.extract_strided_slice %24 {offsets = [3, 0], sizes = [1, 1], strides = [1, 1]} : vector<4x1xf32> to vector<1x1xf32>
      %47 = vector.broadcast %46 : vector<1x1xf32> to vector<4x1xf32>
      %48 = arith.mulf %45, %47 : vector<4x1xf32>
      %49 = arith.addf %43, %48 : vector<4x1xf32>
      %cst_31 = arith.constant dense<0xFF800000> : vector<1xf32>
      %50 = vector.multi_reduction <maximumf>, %49, %cst_31 [0] : vector<4x1xf32> to vector<1xf32>
      %51 = vector.shape_cast %50 : vector<1xf32> to vector<1x1xf32>
      %c0_32 = arith.constant 0 : index
      %c0_33 = arith.constant 0 : index
      %c0_34 = arith.constant 0 : index
      %52 = vector.load %arg6[%c0_32, %c0_33, %c0_34] : memref<1x2x1xf32, #tpu.memory_space<vmem>>, vector<1x1x1xf32>
      %53 = vector.shape_cast %52 : vector<1x1x1xf32> to vector<1x1xf32>
      %54 = vector.shape_cast %51 : vector<1x1xf32> to vector<1x1x1xf32>
      tpu.vector_store %arg6[%c0_32, %c0_33, %c0_34], %54 {strides = array<i32>} : memref<1x2x1xf32, #tpu.memory_space<vmem>>, vector<1x1x1xf32>,
      %cst_35 = arith.constant dense<0.000000e+00> : vector<1xf32>
      %55 = vector.multi_reduction <add>, %49, %cst_35 [0] : vector<4x1xf32> to vector<1xf32>
      %56 = vector.shape_cast %55 : vector<1xf32> to vector<1x1xf32>
      %cst_36 = arith.constant 4.000000e+00 : f32
      %57 = vector.broadcast %cst_36 : f32 to vector<1x1xf32>
      %58 = arith.divf %56, %57 : vector<1x1xf32>
      %c0_37 = arith.constant 0 : index
      %c1_38 = arith.constant 1 : index
      %c0_39 = arith.constant 0 : index
      %59 = vector.load %arg6[%c0_37, %c1_38, %c0_39] : memref<1x2x1xf32, #tpu.memory_space<vmem>>, vector<1x1x1xf32>
      %60 = vector.shape_cast %59 : vector<1x1x1xf32> to vector<1x1xf32>
      %61 = vector.shape_cast %58 : vector<1x1xf32> to vector<1x1x1xf32>
      tpu.vector_store %arg6[%c0_37, %c1_38, %c0_39], %61 {strides = array<i32>} : memref<1x2x1xf32, #tpu.memory_space<vmem>>, vector<1x1x1xf32>,
      %cst_40 = arith.constant 0.000000e+00 : f32
      %62 = vector.broadcast %cst_40 : f32 to vector<8x1xf32>
      %c0_41 = arith.constant 0 : index
      %c0_42 = arith.constant 0 : index
      %c0_43 = arith.constant 0 : index
      %63 = vector.load %arg5[%c0_41, %c0_42, %c0_43] : memref<4x8x1xf32, #tpu.memory_space<vmem>>, vector<1x8x1xf32>
      %64 = vector.shape_cast %63 : vector<1x8x1xf32> to vector<8x1xf32>
      %65 = vector.extract_strided_slice %49 {offsets = [0, 0], sizes = [1, 1], strides = [1, 1]} : vector<4x1xf32> to vector<1x1xf32>
      %66 = vector.broadcast %65 : vector<1x1xf32> to vector<8x1xf32>
      %67 = arith.mulf %64, %66 : vector<8x1xf32>
      %68 = arith.addf %62, %67 : vector<8x1xf32>
      %c1_44 = arith.constant 1 : index
      %c0_45 = arith.constant 0 : index
      %c0_46 = arith.constant 0 : index
      %69 = vector.load %arg5[%c1_44, %c0_45, %c0_46] : memref<4x8x1xf32, #tpu.memory_space<vmem>>, vector<1x8x1xf32>
      %70 = vector.shape_cast %69 : vector<1x8x1xf32> to vector<8x1xf32>
      %71 = vector.extract_strided_slice %49 {offsets = [1, 0], sizes = [1, 1], strides = [1, 1]} : vector<4x1xf32> to vector<1x1xf32>
      %72 = vector.broadcast %71 : vector<1x1xf32> to vector<8x1xf32>
      %73 = arith.mulf %70, %72 : vector<8x1xf32>
      %74 = arith.addf %68, %73 : vector<8x1xf32>
      %c2_47 = arith.constant 2 : index
      %c0_48 = arith.constant 0 : index
      %c0_49 = arith.constant 0 : index
      %75 = vector.load %arg5[%c2_47, %c0_48, %c0_49] : memref<4x8x1xf32, #tpu.memory_space<vmem>>, vector<1x8x1xf32>
      %76 = vector.shape_cast %75 : vector<1x8x1xf32> to vector<8x1xf32>
      %77 = vector.extract_strided_slice %49 {offsets = [2, 0], sizes = [1, 1], strides = [1, 1]} : vector<4x1xf32> to vector<1x1xf32>
      %78 = vector.broadcast %77 : vector<1x1xf32> to vector<8x1xf32>
      %79 = arith.mulf %76, %78 : vector<8x1xf32>
      %80 = arith.addf %74, %79 : vector<8x1xf32>
      %c3_50 = arith.constant 3 : index
      %c0_51 = arith.constant 0 : index
      %c0_52 = arith.constant 0 : index
      %81 = vector.load %arg5[%c3_50, %c0_51, %c0_52] : memref<4x8x1xf32, #tpu.memory_space<vmem>>, vector<1x8x1xf32>
      %82 = vector.shape_cast %81 : vector<1x8x1xf32> to vector<8x1xf32>
      %83 = vector.extract_strided_slice %49 {offsets = [3, 0], sizes = [1, 1], strides = [1, 1]} : vector<4x1xf32> to vector<1x1xf32>
      %84 = vector.broadcast %83 : vector<1x1xf32> to vector<8x1xf32>
      %85 = arith.mulf %82, %84 : vector<8x1xf32>
      %86 = arith.addf %80, %85 : vector<8x1xf32>
      %c0_53 = arith.constant 0 : index
      %c0_54 = arith.constant 0 : index
      %c0_55 = arith.constant 0 : index
      %87 = vector.load %arg7[%c0_53, %c0_54, %c0_55] : memref<1x8x1xf32, #tpu.memory_space<vmem>>, vector<1x8x1xf32>
      %88 = vector.shape_cast %87 : vector<1x8x1xf32> to vector<8x1xf32>
      %89 = vector.shape_cast %86 : vector<8x1xf32> to vector<1x8x1xf32>
      tpu.vector_store %arg7[%c0_53, %c0_54, %c0_55], %89 {strides = array<i32>} : memref<1x8x1xf32, #tpu.memory_space<vmem>>, vector<1x8x1xf32>,
    } else {
    }
    return
  }
  func.func @transform_0(%arg0: i32, %arg1: i32) -> (i32, i32, i32) {
    %c0_i32 = arith.constant 0 : i32
    %c0_i32_0 = arith.constant 0 : i32
    return %arg0, %c0_i32, %arg1 : i32, i32, i32
  }
  func.func @transform_1(%arg0: i32, %arg1: i32) -> (i32, i32, i32) {
    %c0_i32 = arith.constant 0 : i32
    %c0_i32_0 = arith.constant 0 : i32
    %c0_i32_1 = arith.constant 0 : i32
    %c0_i32_2 = arith.constant 0 : i32
    return %c0_i32, %c0_i32_0, %c0_i32_1 : i32, i32, i32
  }
  func.func @transform_2(%arg0: i32, %arg1: i32) -> (i32, i32) {
    %c0_i32 = arith.constant 0 : i32
    %c0_i32_0 = arith.constant 0 : i32
    %c0_i32_1 = arith.constant 0 : i32
    return %c0_i32, %c0_i32_0 : i32, i32
  }
  func.func @transform_3(%arg0: i32, %arg1: i32) -> (i32, i32, i32) {
    %c0_i32 = arith.constant 0 : i32
    %c0_i32_0 = arith.constant 0 : i32
    %c0_i32_1 = arith.constant 0 : i32
    %c0_i32_2 = arith.constant 0 : i32
    return %c0_i32, %c0_i32_0, %c0_i32_1 : i32, i32, i32
  }
  func.func @transform_4(%arg0: i32, %arg1: i32) -> (i32, i32, i32) {
    %c0_i32 = arith.constant 0 : i32
    %c0_i32_0 = arith.constant 0 : i32
    %c0_i32_1 = arith.constant 0 : i32
    return %arg0, %c0_i32, %c0_i32_0 : i32, i32, i32
  }
  func.func @transform_5(%arg0: i32, %arg1: i32) -> (i32, i32, i32) {
    %c0_i32 = arith.constant 0 : i32
    %c0_i32_0 = arith.constant 0 : i32
    %c0_i32_1 = arith.constant 0 : i32
    return %arg0, %c0_i32, %c0_i32_0 : i32, i32, i32
  }
}

module attributes {stable_mosaic.version = 11 : i64} {
  func.func @fused_out_kernel(%arg0: i32, %arg1: i32, %arg2: memref<1x4x128xf32, #tpu.memory_space<vmem>>, %arg3: memref<2x128xf32, #tpu.memory_space<vmem>>, %arg4: memref<1x2x1xf32, #tpu.memory_space<vmem>>, %arg5: memref<1x8x1xf32, #tpu.memory_space<vmem>>, %arg6: memref<4x8x1xf32, #tpu.memory_space<vmem>>, %arg7: memref<8x1xf32, #tpu.memory_space<vmem>>, %arg8: memref<1x8x128xf32, #tpu.memory_space<vmem>>) attributes {dimension_semantics = [#tpu.dimension_semantics<parallel>, #tpu.dimension_semantics<parallel>], iteration_bounds = array<i64: 2, 2>, scalar_prefetch = 0 : i64, scratch_operands = 0 : i64, tpu.core_type = #tpu.core_type<tc>, window_params = [{transform_indices = @transform_0, window_bounds = array<i64: 1, 4, 128>}, {transform_indices = @transform_1, window_bounds = array<i64: 2, 128>}, {transform_indices = @transform_2, window_bounds = array<i64: 1, 2, 1>}, {transform_indices = @transform_3, window_bounds = array<i64: 1, 8, 1>}, {pipeline_mode = #tpu.pipeline_mode<synchronous>, transform_indices = @transform_4, window_bounds = array<i64: 4, 8, 1>}, {pipeline_mode = #tpu.pipeline_mode<synchronous>, transform_indices = @transform_5, window_bounds = array<i64: 8, 1>}, {transform_indices = @transform_6, window_bounds = array<i64: 1, 8, 128>}]} {
    %c0 = arith.constant 0 : index
    %c0_0 = arith.constant 0 : index
    %0 = vector.load %arg3[%c0, %c0_0] : memref<2x128xf32, #tpu.memory_space<vmem>>, vector<2x128xf32>
    %c0_1 = arith.constant 0 : index
    %c0_2 = arith.constant 0 : index
    %c0_3 = arith.constant 0 : index
    %1 = vector.load %arg4[%c0_1, %c0_2, %c0_3] : memref<1x2x1xf32, #tpu.memory_space<vmem>>, vector<1x2x1xf32>
    %2 = vector.shape_cast %1 : vector<1x2x1xf32> to vector<2x1xf32>
    %3 = vector.extract_strided_slice %2 {offsets = [0, 0], sizes = [1, 1], strides = [1, 1]} : vector<2x1xf32> to vector<1x1xf32>
    %4 = vector.extract_strided_slice %0 {offsets = [0, 0], sizes = [1, 128], strides = [1, 1]} : vector<2x128xf32> to vector<1x128xf32>
    %5 = vector.broadcast %3 : vector<1x1xf32> to vector<1x128xf32>
    %6 = arith.mulf %5, %4 : vector<1x128xf32>
    %7 = vector.extract_strided_slice %2 {offsets = [1, 0], sizes = [1, 1], strides = [1, 1]} : vector<2x1xf32> to vector<1x1xf32>
    %8 = vector.extract_strided_slice %0 {offsets = [1, 0], sizes = [1, 128], strides = [1, 1]} : vector<2x128xf32> to vector<1x128xf32>
    %9 = vector.broadcast %7 : vector<1x1xf32> to vector<1x128xf32>
    %10 = arith.mulf %9, %8 : vector<1x128xf32>
    %11 = arith.addf %6, %10 : vector<1x128xf32>
    %12 = arith.negf %11 : vector<1x128xf32>
    %13 = math.exp %12 : vector<1x128xf32>
    %cst = arith.constant 1.000000e+00 : f32
    %14 = vector.broadcast %cst : f32 to vector<1x128xf32>
    %15 = arith.addf %14, %13 : vector<1x128xf32>
    %16 = arith.divf %14, %15 : vector<1x128xf32>
    %c0_4 = arith.constant 0 : index
    %c0_5 = arith.constant 0 : index
    %c0_6 = arith.constant 0 : index
    %17 = vector.load %arg5[%c0_4, %c0_5, %c0_6] : memref<1x8x1xf32, #tpu.memory_space<vmem>>, vector<1x8x1xf32>
    %18 = vector.shape_cast %17 : vector<1x8x1xf32> to vector<8x1xf32>
    %19 = vector.broadcast %16 : vector<1x128xf32> to vector<8x128xf32>
    %20 = vector.broadcast %18 : vector<8x1xf32> to vector<8x128xf32>
    %21 = arith.mulf %19, %20 : vector<8x128xf32>
    %c0_7 = arith.constant 0 : index
    %c0_8 = arith.constant 0 : index
    %22 = vector.load %arg7[%c0_7, %c0_8] : memref<8x1xf32, #tpu.memory_space<vmem>>, vector<8x1xf32>
    %23 = vector.broadcast %22 : vector<8x1xf32> to vector<8x128xf32>
    %24 = arith.addf %21, %23 : vector<8x128xf32>
    %c0_9 = arith.constant 0 : index
    %c0_10 = arith.constant 0 : index
    %c0_11 = arith.constant 0 : index
    %25 = vector.load %arg2[%c0_9, %c0_10, %c0_11] : memref<1x4x128xf32, #tpu.memory_space<vmem>>, vector<1x4x128xf32>
    %26 = vector.shape_cast %25 : vector<1x4x128xf32> to vector<4x128xf32>
    %c0_12 = arith.constant 0 : index
    %c0_13 = arith.constant 0 : index
    %c0_14 = arith.constant 0 : index
    %27 = vector.load %arg6[%c0_12, %c0_13, %c0_14] : memref<4x8x1xf32, #tpu.memory_space<vmem>>, vector<1x8x1xf32>
    %28 = vector.shape_cast %27 : vector<1x8x1xf32> to vector<8x1xf32>
    %29 = vector.extract_strided_slice %26 {offsets = [0, 0], sizes = [1, 128], strides = [1, 1]} : vector<4x128xf32> to vector<1x128xf32>
    %30 = vector.broadcast %28 : vector<8x1xf32> to vector<8x128xf32>
    %31 = vector.broadcast %29 : vector<1x128xf32> to vector<8x128xf32>
    %32 = arith.mulf %30, %31 : vector<8x128xf32>
    %33 = arith.addf %24, %32 : vector<8x128xf32>
    %c1 = arith.constant 1 : index
    %c0_15 = arith.constant 0 : index
    %c0_16 = arith.constant 0 : index
    %34 = vector.load %arg6[%c1, %c0_15, %c0_16] : memref<4x8x1xf32, #tpu.memory_space<vmem>>, vector<1x8x1xf32>
    %35 = vector.shape_cast %34 : vector<1x8x1xf32> to vector<8x1xf32>
    %36 = vector.extract_strided_slice %26 {offsets = [1, 0], sizes = [1, 128], strides = [1, 1]} : vector<4x128xf32> to vector<1x128xf32>
    %37 = vector.broadcast %35 : vector<8x1xf32> to vector<8x128xf32>
    %38 = vector.broadcast %36 : vector<1x128xf32> to vector<8x128xf32>
    %39 = arith.mulf %37, %38 : vector<8x128xf32>
    %40 = arith.addf %33, %39 : vector<8x128xf32>
    %c2 = arith.constant 2 : index
    %c0_17 = arith.constant 0 : index
    %c0_18 = arith.constant 0 : index
    %41 = vector.load %arg6[%c2, %c0_17, %c0_18] : memref<4x8x1xf32, #tpu.memory_space<vmem>>, vector<1x8x1xf32>
    %42 = vector.shape_cast %41 : vector<1x8x1xf32> to vector<8x1xf32>
    %43 = vector.extract_strided_slice %26 {offsets = [2, 0], sizes = [1, 128], strides = [1, 1]} : vector<4x128xf32> to vector<1x128xf32>
    %44 = vector.broadcast %42 : vector<8x1xf32> to vector<8x128xf32>
    %45 = vector.broadcast %43 : vector<1x128xf32> to vector<8x128xf32>
    %46 = arith.mulf %44, %45 : vector<8x128xf32>
    %47 = arith.addf %40, %46 : vector<8x128xf32>
    %c3 = arith.constant 3 : index
    %c0_19 = arith.constant 0 : index
    %c0_20 = arith.constant 0 : index
    %48 = vector.load %arg6[%c3, %c0_19, %c0_20] : memref<4x8x1xf32, #tpu.memory_space<vmem>>, vector<1x8x1xf32>
    %49 = vector.shape_cast %48 : vector<1x8x1xf32> to vector<8x1xf32>
    %50 = vector.extract_strided_slice %26 {offsets = [3, 0], sizes = [1, 128], strides = [1, 1]} : vector<4x128xf32> to vector<1x128xf32>
    %51 = vector.broadcast %49 : vector<8x1xf32> to vector<8x128xf32>
    %52 = vector.broadcast %50 : vector<1x128xf32> to vector<8x128xf32>
    %53 = arith.mulf %51, %52 : vector<8x128xf32>
    %54 = arith.addf %47, %53 : vector<8x128xf32>
    %c0_21 = arith.constant 0 : index
    %c0_22 = arith.constant 0 : index
    %c0_23 = arith.constant 0 : index
    %55 = vector.load %arg8[%c0_21, %c0_22, %c0_23] : memref<1x8x128xf32, #tpu.memory_space<vmem>>, vector<1x8x128xf32>
    %56 = vector.shape_cast %55 : vector<1x8x128xf32> to vector<8x128xf32>
    %57 = vector.shape_cast %54 : vector<8x128xf32> to vector<1x8x128xf32>
    tpu.vector_store %arg8[%c0_21, %c0_22, %c0_23], %57 {strides = array<i32>} : memref<1x8x128xf32, #tpu.memory_space<vmem>>, vector<1x8x128xf32>,
    return
  }
  func.func @transform_0(%arg0: i32, %arg1: i32) -> (i32, i32, i32) {
    %c0_i32 = arith.constant 0 : i32
    %c0_i32_0 = arith.constant 0 : i32
    return %arg0, %c0_i32, %arg1 : i32, i32, i32
  }
  func.func @transform_1(%arg0: i32, %arg1: i32) -> (i32, i32) {
    %c0_i32 = arith.constant 0 : i32
    %c0_i32_0 = arith.constant 0 : i32
    return %c0_i32, %arg1 : i32, i32
  }
  func.func @transform_2(%arg0: i32, %arg1: i32) -> (i32, i32, i32) {
    %c0_i32 = arith.constant 0 : i32
    %c0_i32_0 = arith.constant 0 : i32
    %c0_i32_1 = arith.constant 0 : i32
    return %arg0, %c0_i32, %c0_i32_0 : i32, i32, i32
  }
  func.func @transform_3(%arg0: i32, %arg1: i32) -> (i32, i32, i32) {
    %c0_i32 = arith.constant 0 : i32
    %c0_i32_0 = arith.constant 0 : i32
    %c0_i32_1 = arith.constant 0 : i32
    return %arg0, %c0_i32, %c0_i32_0 : i32, i32, i32
  }
  func.func @transform_4(%arg0: i32, %arg1: i32) -> (i32, i32, i32) {
    %c0_i32 = arith.constant 0 : i32
    %c0_i32_0 = arith.constant 0 : i32
    %c0_i32_1 = arith.constant 0 : i32
    %c0_i32_2 = arith.constant 0 : i32
    return %c0_i32, %c0_i32_0, %c0_i32_1 : i32, i32, i32
  }
  func.func @transform_5(%arg0: i32, %arg1: i32) -> (i32, i32) {
    %c0_i32 = arith.constant 0 : i32
    %c0_i32_0 = arith.constant 0 : i32
    %c0_i32_1 = arith.constant 0 : i32
    return %c0_i32, %c0_i32_0 : i32, i32
  }
  func.func @transform_6(%arg0: i32, %arg1: i32) -> (i32, i32, i32) {
    %c0_i32 = arith.constant 0 : i32
    %c0_i32_0 = arith.constant 0 : i32
    return %arg0, %c0_i32, %arg1 : i32, i32, i32
  }
}

</mosaic_0001>

<llo_original>
// kernel: ha_forward.3
$region0: #{ha_forward.3}
  #allocation0 [shape = 'u32[]', space=smem, size = 0x4, offset = 0x4, fixed_abs, tag = 'smem constant byte address 0x4 - core index']
  #allocation1 [shape = 'u32[72,128]{1,0:T(1,128)}', space=vmem, size = 0x9000, scoped, tag = 'internal scratch']
  %s0 = inlined_call_operand.vmem [shape: f32[2,4,256], index: 0, kind: input, shape index: {}]
  %s1 = inlined_call_operand.vmem [shape: f32[2,256], index: 1, kind: input, shape index: {}]
  %s2 = inlined_call_operand.vmem [shape: f32[2,2,1], index: 2, kind: input, shape index: {}]
  %s3 = inlined_call_operand.vmem [shape: f32[2,8,1], index: 3, kind: input, shape index: {}]
  %s4 = inlined_call_operand.vmem [shape: f32[4,8,1], index: 4, kind: input, shape index: {}]
  %s5 = inlined_call_operand.vmem [shape: f32[8,1], index: 5, kind: input, shape index: {}]
  %s6 = inlined_call_operand.vmem [shape: f32[2,8,256], index: 6, kind: output, shape index: {}]
  %s7 = sld [smem:[#allocation0]]
  $region57: #{ha_forward.3} parent=0
    _
  %s9 = ssub.s32 1, %s7
  %s10 = scalar_select 0, %s9, %s7
  loop: start=0, step=1, limit=6
  $region2: #{ha_forward.3} parent=0 // loop_pre_header
    _
  $region3: #{ha_forward.3} parent=0 // loop_header
    %s12 = sphi 0, %s16
    %p13 = scmp.ge.s32.totalorder %s12, 6
    %s19 = sphi 0, %s31
    %s20 = sphi 0, %s27
    %s21 = sphi 0, %s19
    %s22 = sphi 0, %s20
    %s23 = sphi 0, %s21
    %s24 = sphi 0, %s22
    %s36 = sphi 0, %s38
    %s39 = sphi 0, %s36
    %s40 = sphi 0, %s39
    %s56 = sphi 0, %s40
    %s62 = sphi 0, %s64
    %s65 = sphi 0, %s62
    %s66 = sphi 0, %s65
    %s82 = sphi 0, %s66
    %s88 = sphi 0, %s90
    %s91 = sphi 0, %s88
    %s92 = sphi 0, %s91
    %s108 = sphi 0, %s92
    %s114 = sphi 0, %s116
    %s117 = sphi 0, %s114
    %s118 = sphi 0, %s117
    %s134 = sphi 0, %s118
    %s138 = sphi 0, %s138
    %s140 = sphi 0, %s138
    %s141 = sphi 0, %s140
    %s155 = sphi 0, %s141
    %s159 = sphi 0, %s159
    %s161 = sphi 0, %s159
    %s162 = sphi 0, %s161
    %s176 = sphi 0, %s162
    %s184 = sphi 0, %s186
    %s187 = sphi 0, %s184
    %s188 = sphi 0, %s187
    %s204 = sphi 0, %s188
  $region4: #{ha_forward.3} parent=0 // loop_header_branch
    %15 = sbr.rel (%p13) target = $region8
  $region5: #{ha_forward.3} parent=0 // loop_body
    %s17 = ssub.s32 %s12, 1
    %s18 = ssub.s32 %s12, 2
    %s25 = sadd.s32 1, %s20
    %p26 = scmp.ge.s32.totalorder %s25, 2
    %s27 = scalar_select %p26, 0, %s25
    %s28 = sadd.s32 1, %s19
    %s29 = scalar_select %p26, %s28, %s19
    %p30 = scmp.ge.s32.totalorder %s29, 2
    %s31 = scalar_select %p30, 0, %s29
    %s32 = ssub.s32 %s19, %s31
    %s33 = ssub.s32 %s20, %s27
    %s34 = sor.u32 %s32, %s33
    %p35 = scmp.eq.s32.totalorder %s34, 0
    %s37 = sadd.s32 %s36, 1
    %s38 = scalar_select %p35, %s36, %s37
    %p41 = pneg %p35
    %p42 = scmp.eq.s32.totalorder %s12, 3
    %p43 = por %p41, %p42
    %p44 = scmp.ne.s32.totalorder %s36, %s39
    %p45 = scmp.eq.s32.totalorder %s12, 0
    %p46 = por %p44, %p45
    %p47 = scmp.ne.s32.totalorder %s36, %s39
    %p48 = scmp.eq.s32.totalorder %s17, 3
    %p49 = por %p47, %p48
    %p50 = scmp.ne.s32.totalorder %s39, %s40
    %p51 = scmp.eq.s32.totalorder %s17, 0
    %p52 = por %p50, %p51
    %p53 = scmp.ne.s32.totalorder %s39, %s40
    %p54 = scmp.eq.s32.totalorder %s18, 3
    %p55 = por %p53, %p54
    %p57 = scmp.ne.s32.totalorder %s40, %s56
    %p58 = scmp.eq.s32.totalorder %s18, 0
    %p59 = por %p57, %p58
    %s60 = ssub.s32 %s20, %s27
    %p61 = scmp.eq.s32.totalorder %s60, 0
    %s63 = sadd.s32 %s62, 1
    %s64 = scalar_select %p61, %s62, %s63
    %p67 = pneg %p61
    %p68 = scmp.eq.s32.totalorder %s12, 3
    %p69 = por %p67, %p68
    %p70 = scmp.ne.s32.totalorder %s62, %s65
    %p71 = scmp.eq.s32.totalorder %s12, 0
    %p72 = por %p70, %p71
    %p73 = scmp.ne.s32.totalorder %s62, %s65
    %p74 = scmp.eq.s32.totalorder %s17, 3
    %p75 = por %p73, %p74
    %p76 = scmp.ne.s32.totalorder %s65, %s66
    %p77 = scmp.eq.s32.totalorder %s17, 0
    %p78 = por %p76, %p77
    %p79 = scmp.ne.s32.totalorder %s65, %s66
    %p80 = scmp.eq.s32.totalorder %s18, 3
    %p81 = por %p79, %p80
    %p83 = scmp.ne.s32.totalorder %s66, %s82
    %p84 = scmp.eq.s32.totalorder %s18, 0
    %p85 = por %p83, %p84
    %s86 = ssub.s32 %s19, %s31
    %p87 = scmp.eq.s32.totalorder %s86, 0
    %s89 = sadd.s32 %s88, 1
    %s90 = scalar_select %p87, %s88, %s89
    %p93 = pneg %p87
    %p94 = scmp.eq.s32.totalorder %s12, 3
    %p95 = por %p93, %p94
    %p96 = scmp.ne.s32.totalorder %s88, %s91
    %p97 = scmp.eq.s32.totalorder %s12, 0
    %p98 = por %p96, %p97
    %p99 = scmp.ne.s32.totalorder %s88, %s91
    %p100 = scmp.eq.s32.totalorder %s17, 3
    %p101 = por %p99, %p100
    %p102 = scmp.ne.s32.totalorder %s91, %s92
    %p103 = scmp.eq.s32.totalorder %s17, 0
    %p104 = por %p102, %p103
    %p105 = scmp.ne.s32.totalorder %s91, %s92
    %p106 = scmp.eq.s32.totalorder %s18, 3
    %p107 = por %p105, %p106
    %p109 = scmp.ne.s32.totalorder %s92, %s108
    %p110 = scmp.eq.s32.totalorder %s18, 0
    %p111 = por %p109, %p110
    %s112 = ssub.s32 %s19, %s31
    %p113 = scmp.eq.s32.totalorder %s112, 0
    %s115 = sadd.s32 %s114, 1
    %s116 = scalar_select %p113, %s114, %s115
    %p119 = pneg %p113
    %p120 = scmp.eq.s32.totalorder %s12, 3
    %p121 = por %p119, %p120
    %p122 = scmp.ne.s32.totalorder %s114, %s117
    %p123 = scmp.eq.s32.totalorder %s12, 0
    %p124 = por %p122, %p123
    %p125 = scmp.ne.s32.totalorder %s114, %s117
    %p126 = scmp.eq.s32.totalorder %s17, 3
    %p127 = por %p125, %p126
    %p128 = scmp.ne.s32.totalorder %s117, %s118
    %p129 = scmp.eq.s32.totalorder %s17, 0
    %p130 = por %p128, %p129
    %p131 = scmp.ne.s32.totalorder %s117, %s118
    %p132 = scmp.eq.s32.totalorder %s18, 3
    %p133 = por %p131, %p132
    %p135 = scmp.ne.s32.totalorder %s118, %s134
    %p136 = scmp.eq.s32.totalorder %s18, 0
    %p137 = por %p135, %p136
    %s139 = sadd.s32 %s138, 1
    %p142 = scmp.eq.s32.totalorder %s12, 3
    %p143 = scmp.ne.s32.totalorder %s138, %s140
    %p144 = scmp.eq.s32.totalorder %s12, 0
    %p145 = por %p143, %p144
    %p146 = scmp.ne.s32.totalorder %s138, %s140
    %p147 = scmp.eq.s32.totalorder %s17, 3
    %p148 = por %p146, %p147
    %p149 = scmp.ne.s32.totalorder %s140, %s141
    %p150 = scmp.eq.s32.totalorder %s17, 0
    %p151 = por %p149, %p150
    %p152 = scmp.ne.s32.totalorder %s140, %s141
    %p153 = scmp.eq.s32.totalorder %s18, 3
    %p154 = por %p152, %p153
    %p156 = scmp.ne.s32.totalorder %s141, %s155
    %p157 = scmp.eq.s32.totalorder %s18, 0
    %p158 = por %p156, %p157
    %s160 = sadd.s32 %s159, 1
    %p163 = scmp.eq.s32.totalorder %s12, 3
    %p164 = scmp.ne.s32.totalorder %s159, %s161
    %p165 = scmp.eq.s32.totalorder %s12, 0
    %p166 = por %p164, %p165
    %p167 = scmp.ne.s32.totalorder %s159, %s161
    %p168 = scmp.eq.s32.totalorder %s17, 3
    %p169 = por %p167, %p168
    %p170 = scmp.ne.s32.totalorder %s161, %s162
    %p171 = scmp.eq.s32.totalorder %s17, 0
    %p172 = por %p170, %p171
    %p173 = scmp.ne.s32.totalorder %s161, %s162
    %p174 = scmp.eq.s32.totalorder %s18, 3
    %p175 = por %p173, %p174
    %p177 = scmp.ne.s32.totalorder %s162, %s176
    %p178 = scmp.eq.s32.totalorder %s18, 0
    %p179 = por %p177, %p178
    %s180 = ssub.s32 %s19, %s31
    %s181 = ssub.s32 %s20, %s27
    %s182 = sor.u32 %s180, %s181
    %p183 = scmp.eq.s32.totalorder %s182, 0
    %s185 = sadd.s32 %s184, 1
    %s186 = scalar_select %p183, %s184, %s185
    %p189 = pneg %p183
    %p190 = scmp.eq.s32.totalorder %s12, 3
    %p191 = por %p189, %p190
    %p192 = scmp.ne.s32.totalorder %s184, %s187
    %p193 = scmp.eq.s32.totalorder %s12, 0
    %p194 = por %p192, %p193
    %p195 = scmp.ne.s32.totalorder %s184, %s187
    %p196 = scmp.eq.s32.totalorder %s17, 3
    %p197 = por %p195, %p196
    %p198 = scmp.ne.s32.totalorder %s187, %s188
    %p199 = scmp.eq.s32.totalorder %s17, 0
    %p200 = por %p198, %p199
    %p201 = scmp.ne.s32.totalorder %s187, %s188
    %p202 = scmp.eq.s32.totalorder %s18, 3
    %p203 = por %p201, %p202
    %p205 = scmp.ne.s32.totalorder %s188, %s204
    %p206 = scmp.eq.s32.totalorder %s18, 0
    %p207 = por %p205, %p206
    %p208 = scmp.le.s32.totalorder 1, %s12
    %p209 = scmp.lt.s32.totalorder %s12, 5
    %p210 = pnand %p208, %p209
    %p211 = pneg %p210
    // Predicated region
    $region9: #{ha_forward.3} parent=5 // pred_check
      _
    $region10: #{ha_forward.3} parent=5 // pred_check_branch
      %213 = sbr.rel (%p210) target = $region12
    $region11: #{ha_forward.3} parent=5 // pred_region
      %s214 = ssub.s32 %s12, 1
      // Predicated region
      $region13: #{ha_forward.3} parent=11 // pred_check
        %p215 = pneg %p151
      $region14: #{ha_forward.3} parent=11 // pred_check_branch
        %217 = sbr.rel (%p215) target = $region16
      $region15: #{ha_forward.3} parent=11 // pred_region
        _
      $region16: #{ha_forward.3} parent=11 // pred_fallthru
        _
      // Predicated region
      $region17: #{ha_forward.3} parent=11 // pred_check
        %p218 = pneg %p172
      $region18: #{ha_forward.3} parent=11 // pred_check_branch
        %220 = sbr.rel (%p218) target = $region20
      $region19: #{ha_forward.3} parent=11 // pred_region
        _
      $region20: #{ha_forward.3} parent=11 // pred_fallthru
        _
    $region12: #{ha_forward.3} parent=5 // pred_fallthru
      _
    %p221 = scmp.lt.s32.totalorder %s12, 4
    // Predicated region
    $region21: #{ha_forward.3} parent=5 // pred_check
      %p222 = pneg %p221
    $region22: #{ha_forward.3} parent=5 // pred_check_branch
      %224 = sbr.rel (%p222) target = $region24
    $region23: #{ha_forward.3} parent=5 // pred_region
      // Predicated region
      $region25: #{ha_forward.3} parent=23 // pred_check
        %p225 = pneg %p46
      $region26: #{ha_forward.3} parent=23 // pred_check_branch
        %227 = sbr.rel (%p225) target = $region28
      $region27: #{ha_forward.3} parent=23 // pred_region
        %p228 = scmp.lt.s32.totalorder %s19, 1
        %s229 = scalar_select %p228, %s19, 1
        %p230 = scmp.lt.s32.totalorder %s20, 1
        %s231 = scalar_select %p230, %s20, 1
        %s232 = smul.addr %s229, 2
        %s233 = sadd.s32 %s231, %s232
        %s234 = smul.addr %s233, 4
        %s235 = scalar_lea.vmem %s0, %s234
      $region28: #{ha_forward.3} parent=23 // pred_fallthru
        _
      // Predicated region
      $region29: #{ha_forward.3} parent=23 // pred_check
        %p236 = pneg %p72
      $region30: #{ha_forward.3} parent=23 // pred_check_branch
        %238 = sbr.rel (%p236) target = $region32
      $region31: #{ha_forward.3} parent=23 // pred_region
        %p239 = scmp.lt.s32.totalorder %s20, 1
        %s240 = scalar_select %p239, %s20, 1
        %s241 = smul.addr %s240, 2
        %s242 = scalar_lea.vmem %s1, %s241
      $region32: #{ha_forward.3} parent=23 // pred_fallthru
        _
      // Predicated region
      $region33: #{ha_forward.3} parent=23 // pred_check
        %p243 = pneg %p98
      $region34: #{ha_forward.3} parent=23 // pred_check_branch
        %245 = sbr.rel (%p243) target = $region36
      $region35: #{ha_forward.3} parent=23 // pred_region
        %p246 = scmp.lt.s32.totalorder %s19, 1
        %s247 = scalar_select %p246, %s19, 1
        %s248 = smul.addr %s247, 2
        %s249 = scalar_lea.vmem %s2, %s248
      $region36: #{ha_forward.3} parent=23 // pred_fallthru
        _
      // Predicated region
      $region37: #{ha_forward.3} parent=23 // pred_check
        %p250 = pneg %p124
      $region38: #{ha_forward.3} parent=23 // pred_check_branch
        %252 = sbr.rel (%p250) target = $region40
      $region39: #{ha_forward.3} parent=23 // pred_region
        %p253 = scmp.lt.s32.totalorder %s19, 1
        %s254 = scalar_select %p253, %s19, 1
        %s255 = smul.addr %s254, 8
        %s256 = scalar_lea.vmem %s3, %s255
      $region40: #{ha_forward.3} parent=23 // pred_fallthru
        _
    $region24: #{ha_forward.3} parent=5 // pred_fallthru
      _
    %p257 = scmp.le.s32.totalorder 1, %s12
    %p258 = scmp.lt.s32.totalorder %s12, 5
    %p259 = pnand %p257, %p258
    %p260 = pneg %p259
    // Predicated region
    $region41: #{ha_forward.3} parent=5 // pred_check
      _
    $region42: #{ha_forward.3} parent=5 // pred_check_branch
      %262 = sbr.rel (%p259) target = $region44
    $region43: #{ha_forward.3} parent=5 // pred_region
      %s263 = ssub.s32 %s12, 1
      %p264 = scmp.lt.s32.totalorder %s21, 1
      %s265 = scalar_select %p264, %s21, 1
      %p266 = scmp.lt.s32.totalorder %s22, 1
      %s267 = scalar_select %p266, %s22, 1
      %s268 = smul.addr %s265, 2
      %s269 = sadd.s32 %s267, %s268
      %s270 = smul.addr %s269, 4
      %s271 = scalar_lea.vmem %s0, %s270
      %p272 = pneg %p52
      %p273 = pneg %p49
      %p274 = scmp.lt.s32.totalorder %s22, 1
      %s275 = scalar_select %p274, %s22, 1
      %s276 = smul.addr %s275, 2
      %s277 = scalar_lea.vmem %s1, %s276
      %p278 = pneg %p78
      %p279 = pneg %p75
      %p280 = scmp.lt.s32.totalorder %s21, 1
      %s281 = scalar_select %p280, %s21, 1
      %s282 = smul.addr %s281, 2
      %s283 = scalar_lea.vmem %s2, %s282
      %p284 = pneg %p104
      %p285 = pneg %p101
      %p286 = scmp.lt.s32.totalorder %s21, 1
      %s287 = scalar_select %p286, %s21, 1
      %s288 = smul.addr %s287, 8
      %s289 = scalar_lea.vmem %s3, %s288
      %p290 = pneg %p130
      %p291 = pneg %p127
      %p292 = pneg %p151
      %p293 = pneg %p148
      %p294 = pneg %p172
      %p295 = pneg %p169
      %p296 = pneg %p200
      %p297 = pneg %p197
      %p298 = scmp.lt.s32.totalorder %s21, 1
      %s299 = scalar_select %p298, %s21, 1
      %p300 = scmp.lt.s32.totalorder %s22, 1
      %s301 = scalar_select %p300, %s22, 1
      %s302 = smul.addr %s299, 2
      %s303 = sadd.s32 %s301, %s302
      %s304 = smul.addr %s303, 8
      %s305 = scalar_lea.vmem %s6, %s304
      %p306 = scmp.lt.s32.totalorder %s21, 1
      %s307 = scalar_select %p306, %s21, 1
      %p308 = scmp.lt.s32.totalorder %s22, 1
      %s309 = scalar_select %p308, %s22, 1
      %s310 = smul.addr %s307, 2
      %s311 = sadd.s32 %s309, %s310
      %s312 = smul.addr %s311, 4
      %s313 = scalar_lea.vmem %s0, %s312
      %p314 = scmp.lt.s32.totalorder %s22, 1
      %s315 = scalar_select %p314, %s22, 1
      %s316 = smul.addr %s315, 2
      %s317 = scalar_lea.vmem %s1, %s316
      %p318 = scmp.lt.s32.totalorder %s21, 1
      %s319 = scalar_select %p318, %s21, 1
      %s320 = smul.addr %s319, 2
      %s321 = scalar_lea.vmem %s2, %s320
      %p322 = scmp.lt.s32.totalorder %s21, 1
      %s323 = scalar_select %p322, %s21, 1
      %s324 = smul.addr %s323, 8
      %s325 = scalar_lea.vmem %s3, %s324
      %p326 = scmp.lt.s32.totalorder %s21, 1
      %s327 = scalar_select %p326, %s21, 1
      %p328 = scmp.lt.s32.totalorder %s22, 1
      %s329 = scalar_select %p328, %s22, 1
      %s330 = smul.addr %s327, 2
      %s331 = sadd.s32 %s329, %s330
      %s332 = smul.addr %s331, 8
      %s333 = scalar_lea.vmem %s6, %s332
      %v334 = vld [vmem:[%s317] sm:$0x3]
      %v335 = vld [vmem:[%s321] sm:$0x3]
      %337 = vset.pattern.permute.xlu0 0
      %338 = vperm.xlu0 %337, %v335
      %v339 = vpop.permute.xlu0 %338
      %v341 = vmul.f32 %v339, %v334
      %v343 = vrot.slane %v341, 1
      %v345 = vadd.f32 %v341, %v343
      %v346 = vxor.u32 %v345, 2147483648
      %v347 = vmul.f32 %v346, 1.442695
      %v348 = vpow.pop %v347
      %v349 = vadd.f32 %v348, 1.0
      %v350 = vrcp.pop %v349
      %v351 = vmul.f32 %v349, %v350
      %v352 = vsub.f32 1.0, %v351
      %v353 = vmul.f32 %v350, %v352
      %v354 = vadd.f32 %v350, %v353
      %vm355 = vweird.f32 %v349
      %vm356 = vweird.f32 %v350
      %vm357 = vmor %vm355, %vm356
      %v358 = vsel %vm357, %v350, %v354
      %v359 = vand.u32 2147483647, %v349
      %vm360 = vcmp.eq.f32.partialorder %v359, 8.507059e+37
      %v361 = vand.u32 %v349, 2147483648
      %v362 = vor.u32 1.1754944e-38, %v361
      %v363 = vsel %vm360, %v362, %v358
      %v364 = vmul.f32 1.0, %v363
      %v365 = vld [vmem:[%s325] sm:$0xff]
      %v366 = vperm.slane %v364, 0
      %368 = vset.pattern.permute.xlu0 0
      %369 = vperm.xlu0 %368, %v365
      %v370 = vpop.permute.xlu0 %369
      %v372 = vmul.f32 %v366, %v370
      %v373 = vld [vmem:[%s5] sm:$0xff]
      %375 = vset.pattern.permute.xlu0 0
      %376 = vperm.xlu0 %375, %v373
      %v377 = vpop.permute.xlu0 %376
      %v379 = vadd.f32 %v372, %v377
      %v380 = vld [vmem:[%s313] sm:$0xf]
      %v381 = vld [vmem:[%s4] sm:$0xff]
      %383 = vset.pattern.permute.xlu0 0
      %384 = vperm.xlu0 %383, %v381
      %v385 = vpop.permute.xlu0 %384
      %v387 = vperm.slane %v380, 0
      %v388 = vmul.f32 %v385, %v387
      %v389 = vadd.f32 %v379, %v388
      %s390 = scalar_lea.vmem %s4, 8
      %v391 = vld [vmem:[%s390] sm:$0xff]
      %393 = vset.pattern.permute.xlu0 0
      %394 = vperm.xlu0 %393, %v391
      %v395 = vpop.permute.xlu0 %394
      %v397 = vperm.slane %v380, 1
      %v398 = vmul.f32 %v395, %v397
      %v399 = vadd.f32 %v389, %v398
      %s400 = scalar_lea.vmem %s4, 16
      %v401 = vld [vmem:[%s400] sm:$0xff]
      %403 = vset.pattern.permute.xlu0 0
      %404 = vperm.xlu0 %403, %v401
      %v405 = vpop.permute.xlu0 %404
      %v407 = vperm.slane %v380, 2
      %v408 = vmul.f32 %v405, %v407
      %v409 = vadd.f32 %v399, %v408
      %s410 = scalar_lea.vmem %s4, 24
      %v411 = vld [vmem:[%s410] sm:$0xff]
      %413 = vset.pattern.permute.xlu0 0
      %414 = vperm.xlu0 %413, %v411
      %v415 = vpop.permute.xlu0 %414
      %v417 = vperm.slane %v380, 3
      %v418 = vmul.f32 %v415, %v417
      %v419 = vadd.f32 %v409, %v418
      %420 = vst [vmem:[%s333] sm:$0xff] %v419
      %p421 = scmp.lt.s32.totalorder %s21, 1
      %s422 = scalar_select %p421, %s21, 1
      %p423 = scmp.lt.s32.totalorder %s22, 1
      %s424 = scalar_select %p423, %s22, 1
      %s425 = smul.addr %s422, 2
      %s426 = sadd.s32 %s424, %s425
      %s427 = smul.addr %s426, 8
      %s428 = scalar_lea.vmem %s6, %s427
      // Predicated region
      $region45: #{ha_forward.3} parent=43 // pred_check
        %p429 = pneg %p197
      $region46: #{ha_forward.3} parent=43 // pred_check_branch
        %431 = sbr.rel (%p429) target = $region48
      $region47: #{ha_forward.3} parent=43 // pred_region
        _
      $region48: #{ha_forward.3} parent=43 // pred_fallthru
        _
    $region44: #{ha_forward.3} parent=5 // pred_fallthru
      _
    %p432 = scmp.le.s32.totalorder 2, %s12
    // Predicated region
    $region49: #{ha_forward.3} parent=5 // pred_check
      %p433 = pneg %p432
    $region50: #{ha_forward.3} parent=5 // pred_check_branch
      %435 = sbr.rel (%p433) target = $region52
    $region51: #{ha_forward.3} parent=5 // pred_region
      %s436 = ssub.s32 %s12, 2
      // Predicated region
      $region53: #{ha_forward.3} parent=51 // pred_check
        %p437 = pneg %p203
      $region54: #{ha_forward.3} parent=51 // pred_check_branch
        %439 = sbr.rel (%p437) target = $region56
      $region55: #{ha_forward.3} parent=51 // pred_region
        %p440 = scmp.lt.s32.totalorder %s23, 1
        %s441 = scalar_select %p440, %s23, 1
        %p442 = scmp.lt.s32.totalorder %s24, 1
        %s443 = scalar_select %p442, %s24, 1
        %s444 = smul.addr %s441, 2
        %s445 = sadd.s32 %s443, %s444
        %s446 = smul.addr %s445, 8
        %s447 = scalar_lea.vmem %s6, %s446
      $region56: #{ha_forward.3} parent=51 // pred_fallthru
        _
    $region52: #{ha_forward.3} parent=5 // pred_fallthru
      _
  $region6: #{ha_forward.3} parent=0 // loop_footer
    %s16 = sadd.s32 1, %s12
  $region7: #{ha_forward.3} parent=0 // loop_footer_branch
    %11 = sbr.rel target = $region3
  $region8: #{ha_forward.3} parent=0 // loop_exit
    _

// kernel: ha_forward.2
$region0: #{ha_forward.2}
  #allocation0 [shape = 'u32[]', space=smem, size = 0x4, offset = 0x4, fixed_abs, tag = 'smem constant byte address 0x4 - core index']
  #allocation1 [shape = 'u32[72,128]{1,0:T(1,128)}', space=vmem, size = 0x9000, scoped, tag = 'internal scratch']
  #allocation2 [shape = 'f32[4,1]{1,0:T(4,128)}', space=vmem, size = 0x800, scoped, tag = 'scratch operand']
  #allocation3 [shape = 'f32[4,1]{1,0:T(4,128)}', space=vmem, size = 0x800, scoped, tag = 'scratch operand']
  %s0 = inlined_call_operand.vmem [shape: f32[2,4,256], index: 0, kind: input, shape index: {}]
  %s1 = inlined_call_operand.vmem [shape: f32[4,4,1], index: 1, kind: input, shape index: {}]
  %s2 = inlined_call_operand.vmem [shape: f32[4,1], index: 2, kind: input, shape index: {}]
  %s3 = inlined_call_operand.vmem [shape: f32[4,8,1], index: 3, kind: input, shape index: {}]
  %s4 = inlined_call_operand.vmem [shape: f32[2,2,1], index: 4, kind: output, shape index: {0}]
  %s5 = inlined_call_operand.vmem [shape: f32[2,8,1], index: 5, kind: output, shape index: {1}]
  %6 = xla_tuple %s4, %s5
  %s7 = sld [smem:[#allocation0]]
  $region65: #{ha_forward.2} parent=0
    _
  %s9 = ssub.s32 1, %s7
  %s10 = scalar_select 0, %s9, %s7
  loop: start=0, step=1, limit=4
  $region2: #{ha_forward.2} parent=0 // loop_pre_header
    _
  $region3: #{ha_forward.2} parent=0 // loop_header
    %s12 = sphi 0, %s16
    %p13 = scmp.ge.s32.totalorder %s12, 4
    %s19 = sphi 0, %s31
    %s20 = sphi 0, %s27
    %s21 = sphi 0, %s19
    %s22 = sphi 0, %s20
    %s23 = sphi 0, %s21
    %s24 = sphi 0, %s22
    %s36 = sphi 0, %s38
    %s39 = sphi 0, %s36
    %s40 = sphi 0, %s39
    %s56 = sphi 0, %s40
    %s60 = sphi 0, %s60
    %s62 = sphi 0, %s60
    %s63 = sphi 0, %s62
    %s77 = sphi 0, %s63
    %s81 = sphi 0, %s81
    %s83 = sphi 0, %s81
    %s84 = sphi 0, %s83
    %s98 = sphi 0, %s84
    %s102 = sphi 0, %s102
    %s104 = sphi 0, %s102
    %s105 = sphi 0, %s104
    %s119 = sphi 0, %s105
    %s125 = sphi 0, %s127
    %s128 = sphi 0, %s125
    %s129 = sphi 0, %s128
    %s145 = sphi 0, %s129
    %s151 = sphi 0, %s153
    %s154 = sphi 0, %s151
    %s155 = sphi 0, %s154
    %s171 = sphi 0, %s155
  $region4: #{ha_forward.2} parent=0 // loop_header_branch
    %15 = sbr.rel (%p13) target = $region8
  $region5: #{ha_forward.2} parent=0 // loop_body
    %s17 = ssub.s32 %s12, 1
    %s18 = ssub.s32 %s12, 2
    %s25 = sadd.s32 1, %s20
    %p26 = scmp.ge.s32.totalorder %s25, 1
    %s27 = scalar_select %p26, 0, %s25
    %s28 = sadd.s32 1, %s19
    %s29 = scalar_select %p26, %s28, %s19
    %p30 = scmp.ge.s32.totalorder %s29, 2
    %s31 = scalar_select %p30, 0, %s29
    %s32 = ssub.s32 %s19, %s31
    %s33 = ssub.s32 %s20, %s27
    %s34 = sor.u32 %s32, %s33
    %p35 = scmp.eq.s32.totalorder %s34, 0
    %s37 = sadd.s32 %s36, 1
    %s38 = scalar_select %p35, %s36, %s37
    %p41 = pneg %p35
    %p42 = scmp.eq.s32.totalorder %s12, 1
    %p43 = por %p41, %p42
    %p44 = scmp.ne.s32.totalorder %s36, %s39
    %p45 = scmp.eq.s32.totalorder %s12, 0
    %p46 = por %p44, %p45
    %p47 = scmp.ne.s32.totalorder %s36, %s39
    %p48 = scmp.eq.s32.totalorder %s17, 1
    %p49 = por %p47, %p48
    %p50 = scmp.ne.s32.totalorder %s39, %s40
    %p51 = scmp.eq.s32.totalorder %s17, 0
    %p52 = por %p50, %p51
    %p53 = scmp.ne.s32.totalorder %s39, %s40
    %p54 = scmp.eq.s32.totalorder %s18, 1
    %p55 = por %p53, %p54
    %p57 = scmp.ne.s32.totalorder %s40, %s56
    %p58 = scmp.eq.s32.totalorder %s18, 0
    %p59 = por %p57, %p58
    %s61 = sadd.s32 %s60, 1
    %p64 = scmp.eq.s32.totalorder %s12, 1
    %p65 = scmp.ne.s32.totalorder %s60, %s62
    %p66 = scmp.eq.s32.totalorder %s12, 0
    %p67 = por %p65, %p66
    %p68 = scmp.ne.s32.totalorder %s60, %s62
    %p69 = scmp.eq.s32.totalorder %s17, 1
    %p70 = por %p68, %p69
    %p71 = scmp.ne.s32.totalorder %s62, %s63
    %p72 = scmp.eq.s32.totalorder %s17, 0
    %p73 = por %p71, %p72
    %p74 = scmp.ne.s32.totalorder %s62, %s63
    %p75 = scmp.eq.s32.totalorder %s18, 1
    %p76 = por %p74, %p75
    %p78 = scmp.ne.s32.totalorder %s63, %s77
    %p79 = scmp.eq.s32.totalorder %s18, 0
    %p80 = por %p78, %p79
    %s82 = sadd.s32 %s81, 1
    %p85 = scmp.eq.s32.totalorder %s12, 1
    %p86 = scmp.ne.s32.totalorder %s81, %s83
    %p87 = scmp.eq.s32.totalorder %s12, 0
    %p88 = por %p86, %p87
    %p89 = scmp.ne.s32.totalorder %s81, %s83
    %p90 = scmp.eq.s32.totalorder %s17, 1
    %p91 = por %p89, %p90
    %p92 = scmp.ne.s32.totalorder %s83, %s84
    %p93 = scmp.eq.s32.totalorder %s17, 0
    %p94 = por %p92, %p93
    %p95 = scmp.ne.s32.totalorder %s83, %s84
    %p96 = scmp.eq.s32.totalorder %s18, 1
    %p97 = por %p95, %p96
    %p99 = scmp.ne.s32.totalorder %s84, %s98
    %p100 = scmp.eq.s32.totalorder %s18, 0
    %p101 = por %p99, %p100
    %s103 = sadd.s32 %s102, 1
    %p106 = scmp.eq.s32.totalorder %s12, 1
    %p107 = scmp.ne.s32.totalorder %s102, %s104
    %p108 = scmp.eq.s32.totalorder %s12, 0
    %p109 = por %p107, %p108
    %p110 = scmp.ne.s32.totalorder %s102, %s104
    %p111 = scmp.eq.s32.totalorder %s17, 1
    %p112 = por %p110, %p111
    %p113 = scmp.ne.s32.totalorder %s104, %s105
    %p114 = scmp.eq.s32.totalorder %s17, 0
    %p115 = por %p113, %p114
    %p116 = scmp.ne.s32.totalorder %s104, %s105
    %p117 = scmp.eq.s32.totalorder %s18, 1
    %p118 = por %p116, %p117
    %p120 = scmp.ne.s32.totalorder %s105, %s119
    %p121 = scmp.eq.s32.totalorder %s18, 0
    %p122 = por %p120, %p121
    %s123 = ssub.s32 %s19, %s31
    %p124 = scmp.eq.s32.totalorder %s123, 0
    %s126 = sadd.s32 %s125, 1
    %s127 = scalar_select %p124, %s125, %s126
    %p130 = pneg %p124
    %p131 = scmp.eq.s32.totalorder %s12, 1
    %p132 = por %p130, %p131
    %p133 = scmp.ne.s32.totalorder %s125, %s128
    %p134 = scmp.eq.s32.totalorder %s12, 0
    %p135 = por %p133, %p134
    %p136 = scmp.ne.s32.totalorder %s125, %s128
    %p137 = scmp.eq.s32.totalorder %s17, 1
    %p138 = por %p136, %p137
    %p139 = scmp.ne.s32.totalorder %s128, %s129
    %p140 = scmp.eq.s32.totalorder %s17, 0
    %p141 = por %p139, %p140
    %p142 = scmp.ne.s32.totalorder %s128, %s129
    %p143 = scmp.eq.s32.totalorder %s18, 1
    %p144 = por %p142, %p143
    %p146 = scmp.ne.s32.totalorder %s129, %s145
    %p147 = scmp.eq.s32.totalorder %s18, 0
    %p148 = por %p146, %p147
    %s149 = ssub.s32 %s19, %s31
    %p150 = scmp.eq.s32.totalorder %s149, 0
    %s152 = sadd.s32 %s151, 1
    %s153 = scalar_select %p150, %s151, %s152
    %p156 = pneg %p150
    %p157 = scmp.eq.s32.totalorder %s12, 1
    %p158 = por %p156, %p157
    %p159 = scmp.ne.s32.totalorder %s151, %s154
    %p160 = scmp.eq.s32.totalorder %s12, 0
    %p161 = por %p159, %p160
    %p162 = scmp.ne.s32.totalorder %s151, %s154
    %p163 = scmp.eq.s32.totalorder %s17, 1
    %p164 = por %p162, %p163
    %p165 = scmp.ne.s32.totalorder %s154, %s155
    %p166 = scmp.eq.s32.totalorder %s17, 0
    %p167 = por %p165, %p166
    %p168 = scmp.ne.s32.totalorder %s154, %s155
    %p169 = scmp.eq.s32.totalorder %s18, 1
    %p170 = por %p168, %p169
    %p172 = scmp.ne.s32.totalorder %s155, %s171
    %p173 = scmp.eq.s32.totalorder %s18, 0
    %p174 = por %p172, %p173
    %p175 = scmp.le.s32.totalorder 1, %s12
    %p176 = scmp.lt.s32.totalorder %s12, 3
    %p177 = pnand %p175, %p176
    %p178 = pneg %p177
    // Predicated region
    $region9: #{ha_forward.2} parent=5 // pred_check
      _
    $region10: #{ha_forward.2} parent=5 // pred_check_branch
      %180 = sbr.rel (%p177) target = $region12
    $region11: #{ha_forward.2} parent=5 // pred_region
      %s181 = ssub.s32 %s12, 1
      // Predicated region
      $region13: #{ha_forward.2} parent=11 // pred_check
        %p182 = pneg %p73
      $region14: #{ha_forward.2} parent=11 // pred_check_branch
        %184 = sbr.rel (%p182) target = $region16
      $region15: #{ha_forward.2} parent=11 // pred_region
        _
      $region16: #{ha_forward.2} parent=11 // pred_fallthru
        _
      // Predicated region
      $region17: #{ha_forward.2} parent=11 // pred_check
        %p185 = pneg %p94
      $region18: #{ha_forward.2} parent=11 // pred_check_branch
        %187 = sbr.rel (%p185) target = $region20
      $region19: #{ha_forward.2} parent=11 // pred_region
        _
      $region20: #{ha_forward.2} parent=11 // pred_fallthru
        _
      // Predicated region
      $region21: #{ha_forward.2} parent=11 // pred_check
        %p188 = pneg %p115
      $region22: #{ha_forward.2} parent=11 // pred_check_branch
        %190 = sbr.rel (%p188) target = $region24
      $region23: #{ha_forward.2} parent=11 // pred_region
        _
      $region24: #{ha_forward.2} parent=11 // pred_fallthru
        _
    $region12: #{ha_forward.2} parent=5 // pred_fallthru
      _
    %p191 = scmp.lt.s32.totalorder %s12, 2
    // Predicated region
    $region25: #{ha_forward.2} parent=5 // pred_check
      %p192 = pneg %p191
    $region26: #{ha_forward.2} parent=5 // pred_check_branch
      %194 = sbr.rel (%p192) target = $region28
    $region27: #{ha_forward.2} parent=5 // pred_region
      // Predicated region
      $region29: #{ha_forward.2} parent=27 // pred_check
        %p195 = pneg %p46
      $region30: #{ha_forward.2} parent=27 // pred_check_branch
        %197 = sbr.rel (%p195) target = $region32
      $region31: #{ha_forward.2} parent=27 // pred_region
        %s198 = smul.u32 2, %s20
        %p199 = scmp.lt.s32.totalorder %s19, 1
        %s200 = scalar_select %p199, %s19, 1
        %p201 = scmp.lt.s32.totalorder %s198, 1
        %s202 = scalar_select %p201, %s198, 1
        %s203 = smul.addr %s200, 2
        %s204 = sadd.s32 %s202, %s203
        %s205 = smul.addr %s204, 4
        %s206 = scalar_lea.vmem %s0, %s205
        %s207 = smul.u32 2, %s20
      $region32: #{ha_forward.2} parent=27 // pred_fallthru
        _
    $region28: #{ha_forward.2} parent=5 // pred_fallthru
      _
    %p208 = scmp.le.s32.totalorder 1, %s12
    %p209 = scmp.lt.s32.totalorder %s12, 3
    %p210 = pnand %p208, %p209
    %p211 = pneg %p210
    // Predicated region
    $region33: #{ha_forward.2} parent=5 // pred_check
      _
    $region34: #{ha_forward.2} parent=5 // pred_check_branch
      %213 = sbr.rel (%p210) target = $region36
    $region35: #{ha_forward.2} parent=5 // pred_region
      %s214 = ssub.s32 %s12, 1
      %s215 = smul.u32 2, %s22
      %p216 = scmp.lt.s32.totalorder %s21, 1
      %s217 = scalar_select %p216, %s21, 1
      %p218 = scmp.lt.s32.totalorder %s215, 1
      %s219 = scalar_select %p218, %s215, 1
      %s220 = smul.addr %s217, 2
      %s221 = sadd.s32 %s219, %s220
      %s222 = smul.addr %s221, 4
      %s223 = scalar_lea.vmem %s0, %s222
      %p224 = pneg %p52
      %p225 = pneg %p49
      %p226 = pneg %p73
      %p227 = pneg %p70
      %p228 = pneg %p94
      %p229 = pneg %p91
      %p230 = pneg %p115
      %p231 = pneg %p112
      %p232 = pneg %p141
      %p233 = pneg %p138
      %p234 = scmp.lt.s32.totalorder %s21, 1
      %s235 = scalar_select %p234, %s21, 1
      %s236 = smul.addr %s235, 2
      %s237 = scalar_lea.vmem %s4, %s236
      %p238 = pneg %p167
      %p239 = pneg %p164
      %p240 = scmp.lt.s32.totalorder %s21, 1
      %s241 = scalar_select %p240, %s21, 1
      %s242 = smul.addr %s241, 8
      %s243 = scalar_lea.vmem %s5, %s242
      %s244 = smul.u32 2, %s22
      %p245 = scmp.lt.s32.totalorder %s21, 1
      %s246 = scalar_select %p245, %s21, 1
      %p247 = scmp.lt.s32.totalorder %s244, 1
      %s248 = scalar_select %p247, %s244, 1
      %s249 = smul.addr %s246, 2
      %s250 = sadd.s32 %s248, %s249
      %s251 = smul.addr %s250, 4
      %s252 = scalar_lea.vmem %s0, %s251
      %s253 = smul.u32 2, %s22
      %p254 = scmp.lt.s32.totalorder %s21, 1
      %s255 = scalar_select %p254, %s21, 1
      %s256 = smul.addr %s255, 2
      %s257 = scalar_lea.vmem %s4, %s256
      %p258 = scmp.lt.s32.totalorder %s21, 1
      %s259 = scalar_select %p258, %s21, 1
      %s260 = smul.addr %s259, 8
      %s261 = scalar_lea.vmem %s5, %s260
      %p262 = scmp.eq.s32.totalorder %s22, 0
      // Predicated region
      $region37: #{ha_forward.2} parent=35 // pred_check
        %p263 = pneg %p262
      $region38: #{ha_forward.2} parent=35 // pred_check_branch
        %265 = sbr.rel (%p263) target = $region40
      $region39: #{ha_forward.2} parent=35 // pred_region
        %vm266 = vcmask 3072
        %267 = vst.msk [vmem:[#allocation2] sm:$0xf] %vm266, -inf
        %268 = vst.msk [vmem:[#allocation3] sm:$0xf] %vm266, 0.0
      $region40: #{ha_forward.2} parent=35 // pred_fallthru
        _
      %v269 = vld [vmem:[%s252] sm:$0xff]
      %v270 = vld [vmem:[#allocation2] sm:$0xf]
      %272 = vst [vmem:[#allocation1] ss:$2 sm:$0xff] %v269
      %v273 = vld.sshfl [vmem:[#allocation1] sm:$0xff pattern:$0x75316420]
      %v274 = vld.sshfl [vmem:[#allocation1 + $0x8] sm:$0xff pattern:$0x75316420]
      %vm277 = vcmask 1043456
      %v278 = vsel %vm277, %v273, -inf
      %v279 = vsel %vm277, %v274, -inf
      %v280 = vmax.f32 %v278, %v279
      %281 = vmax.xlane.f32.xlu0 %v280
      %v282 = vpop.xlane.xlu0 %281
      %v283 = vmax.f32 %v270, %v282
      %vm284 = vcmask 3072
      %285 = vst.msk [vmem:[#allocation2] sm:$0xf] %vm284, %v283
      %v286 = vld [vmem:[#allocation3] sm:$0xf]
      %287 = vst [vmem:[#allocation1] ss:$2 sm:$0xff] %v269
      %v288 = vld.sshfl [vmem:[#allocation1] sm:$0xff pattern:$0x75316420]
      %v289 = vld.sshfl [vmem:[#allocation1 + $0x8] sm:$0xff pattern:$0x75316420]
      %v292 = vsel %vm277, %v288, 0.0
      %v293 = vsel %vm277, %v289, 0.0
      %v294 = vadd.f32 %v292, %v293
      %295 = vadd.xlane.f32.xlu0 %v294
      %v296 = vpop.xlane.xlu0 %295
      %v297 = vadd.f32 %v286, %v296
      %298 = vst.msk [vmem:[#allocation3] sm:$0xf] %vm284, %v297
      // Predicated region
      $region41: #{ha_forward.2} parent=35 // pred_check
        %p299 = pneg %p262
      $region42: #{ha_forward.2} parent=35 // pred_check_branch
        %301 = sbr.rel (%p299) target = $region44
      $region43: #{ha_forward.2} parent=35 // pred_region
        %v302 = vld [vmem:[#allocation2] sm:$0xf]
        %v303 = vld [vmem:[#allocation3] sm:$0xf]
        %v304 = vmul.f32 %v303, 0.00390625
        %v305 = vadd.f32 %v302, %v304
        %v306 = vmul.f32 %v305, 0.5
        %v307 = vld [vmem:[%s2] sm:$0xf]
        %v308 = vld [vmem:[%s1] sm:$0xf]
        %v309 = vperm.slane %v306, 0
        %v310 = vmul.f32 %v308, %v309
        %v311 = vadd.f32 %v307, %v310
        %s312 = scalar_lea.vmem %s1, 4
        %v313 = vld [vmem:[%s312] sm:$0xf]
        %v314 = vperm.slane %v306, 1
        %v315 = vmul.f32 %v313, %v314
        %v316 = vadd.f32 %v311, %v315
        %s317 = scalar_lea.vmem %s1, 8
        %v318 = vld [vmem:[%s317] sm:$0xf]
        %v319 = vperm.slane %v306, 2
        %v320 = vmul.f32 %v318, %v319
        %v321 = vadd.f32 %v316, %v320
        %s322 = scalar_lea.vmem %s1, 12
        %v323 = vld [vmem:[%s322] sm:$0xf]
        %v324 = vperm.slane %v306, 3
        %v325 = vmul.f32 %v323, %v324
        %v326 = vadd.f32 %v321, %v325
        %v327 = vsel %vm284, %v326, -inf
        %v328 = vrot.slane %v327, 4
        %v329 = vmax.f32 %v327, %v328
        %v330 = vrot.slane %v329, 2
        %v331 = vmax.f32 %v329, %v330
        %v332 = vrot.slane %v331, 1
        %v333 = vmax.f32 %v331, %v332
        %vm334 = vcmask 0
        %335 = vst.msk [vmem:[%s257] sm:$0x1] %vm334, %v333
        %v336 = vsel %vm284, %v326, 0.0
        %v337 = vrot.slane %v336, 4
        %v338 = vadd.f32 %v336, %v337
        %v339 = vrot.slane %v338, 2
        %v340 = vadd.f32 %v338, %v339
        %v341 = vrot.slane %v340, 1
        %v342 = vadd.f32 %v340, %v341
        %v343 = vrcp.pop 4.0
        %v344 = vmul.f32 4.0, %v343
        %v345 = vsub.f32 1.0, %v344
        %v346 = vmul.f32 %v343, %v345
        %v347 = vadd.f32 %v343, %v346
        %vm348 = vweird.f32 %v343
        %v349 = vsel %vm348, %v343, %v347
        %v350 = vmul.f32 %v342, %v349
        %351 = vst.msk [vmem:[%s257 + $0x1] sm:$0x1] %vm334, %v350
        %v352 = vld [vmem:[%s3] sm:$0xff]
        %v353 = vperm.slane %v326, 0
        %v354 = vmul.f32 %v352, %v353
        %v355 = vadd.f32 %v354, 0.0
        %s356 = scalar_lea.vmem %s3, 8
        %v357 = vld [vmem:[%s356] sm:$0xff]
        %v358 = vperm.slane %v326, 1
        %v359 = vmul.f32 %v357, %v358
        %v360 = vadd.f32 %v355, %v359
        %s361 = scalar_lea.vmem %s3, 16
        %v362 = vld [vmem:[%s361] sm:$0xff]
        %v363 = vperm.slane %v326, 2
        %v364 = vmul.f32 %v362, %v363
        %v365 = vadd.f32 %v360, %v364
        %s366 = scalar_lea.vmem %s3, 24
        %v367 = vld [vmem:[%s366] sm:$0xff]
        %v368 = vperm.slane %v326, 3
        %v369 = vmul.f32 %v367, %v368
        %v370 = vadd.f32 %v365, %v369
        %vm371 = vcmask 7168
        %372 = vst.msk [vmem:[%s261] sm:$0xff] %vm371, %v370
      $region44: #{ha_forward.2} parent=35 // pred_fallthru
        _
      %p373 = scmp.lt.s32.totalorder %s21, 1
      %s374 = scalar_select %p373, %s21, 1
      %s375 = smul.addr %s374, 2
      %s376 = scalar_lea.vmem %s4, %s375
      %p377 = scmp.lt.s32.totalorder %s21, 1
      %s378 = scalar_select %p377, %s21, 1
      %s379 = smul.addr %s378, 8
      %s380 = scalar_lea.vmem %s5, %s379
      // Predicated region
      $region45: #{ha_forward.2} parent=35 // pred_check
        %p381 = pneg %p138
      $region46: #{ha_forward.2} parent=35 // pred_check_branch
        %383 = sbr.rel (%p381) target = $region48
      $region47: #{ha_forward.2} parent=35 // pred_region
        _
      $region48: #{ha_forward.2} parent=35 // pred_fallthru
        _
      // Predicated region
      $region49: #{ha_forward.2} parent=35 // pred_check
        %p384 = pneg %p164
      $region50: #{ha_forward.2} parent=35 // pred_check_branch
        %386 = sbr.rel (%p384) target = $region52
      $region51: #{ha_forward.2} parent=35 // pred_region
        _
      $region52: #{ha_forward.2} parent=35 // pred_fallthru
        _
    $region36: #{ha_forward.2} parent=5 // pred_fallthru
      _
    %p387 = scmp.le.s32.totalorder 2, %s12
    // Predicated region
    $region53: #{ha_forward.2} parent=5 // pred_check
      %p388 = pneg %p387
    $region54: #{ha_forward.2} parent=5 // pred_check_branch
      %390 = sbr.rel (%p388) target = $region56
    $region55: #{ha_forward.2} parent=5 // pred_region
      %s391 = ssub.s32 %s12, 2
      // Predicated region
      $region57: #{ha_forward.2} parent=55 // pred_check
        %p392 = pneg %p144
      $region58: #{ha_forward.2} parent=55 // pred_check_branch
        %394 = sbr.rel (%p392) target = $region60
      $region59: #{ha_forward.2} parent=55 // pred_region
        %p395 = scmp.lt.s32.totalorder %s23, 1
        %s396 = scalar_select %p395, %s23, 1
        %s397 = smul.addr %s396, 2
        %s398 = scalar_lea.vmem %s4, %s397
      $region60: #{ha_forward.2} parent=55 // pred_fallthru
        _
      // Predicated region
      $region61: #{ha_forward.2} parent=55 // pred_check
        %p399 = pneg %p170
      $region62: #{ha_forward.2} parent=55 // pred_check_branch
        %401 = sbr.rel (%p399) target = $region64
      $region63: #{ha_forward.2} parent=55 // pred_region
        %p402 = scmp.lt.s32.totalorder %s23, 1
        %s403 = scalar_select %p402, %s23, 1
        %s404 = smul.addr %s403, 8
        %s405 = scalar_lea.vmem %s5, %s404
      $region64: #{ha_forward.2} parent=55 // pred_fallthru
        _
    $region56: #{ha_forward.2} parent=5 // pred_fallthru
      _
  $region6: #{ha_forward.2} parent=0 // loop_footer
    %s16 = sadd.s32 1, %s12
  $region7: #{ha_forward.2} parent=0 // loop_footer_branch
    %11 = sbr.rel target = $region3
  $region8: #{ha_forward.2} parent=0 // loop_exit
    _

</llo_original>
